<compile_context>
chip_gen: v7x
topology: tpu7x:2x2x1
jax: 0.10.0
libtpu: 0.0.40
codegen_flags: <defaults>
</compile_context>

<pallas_src>
import jax
import jax.numpy as jnp
from jax.experimental import pallas as pl
from jax.experimental.pallas import tpu as pltpu

LANE = 128  # lane-dense width for the packed (B * n_out)-wide output


def _round_up(x, m):
    return ((x + m - 1) // m) * m


def attain_disc_kernel(x_ref, r_ref, bg_ref, p_ref, bo_ref, out_ref):
    """One M-tile of batched forwards; all operands resident in VMEM.

    x:   (mt, B*N)   flattened data tile, one sample per row (lane-dense)
    r:   (B*N, B)    folded row-mean + GCN weight: R[b*N+j, i] = W_g[i, b] / N
    bg:  (1, B)      GCN bias
    p:   (B, LANE)   rank-1 output expansion: P[b, b*n_out + k] = sum_j W_out[k, j]
    bo:  (1, LANE)   output bias broadcast:   bo[0, b*n_out + k] = b_out[k]
    out: (mt, LANE)  lane-dense output; real logits live in lanes [: B*n_out]
    """
    # GCN propagation + linear + bias, relu:  c[m, i] = relu(W_g @ row_mean(data_m) + b_g)[i]
    c = jnp.maximum(
        jnp.dot(x_ref[...], r_ref[...], preferred_element_type=jnp.float32)
        + bg_ref[...],
        0.0)                                                             # (mt, B)
    # Output Linear collapsed to a rank-1 expansion -> full unmasked (mt, 128) store.
    out_ref[...] = (
        jnp.dot(c, p_ref[...], preferred_element_type=jnp.float32) + bo_ref[...]
    ).astype(out_ref.dtype)


def make_attain_discriminator(w_gcn, b_gcn, w_out, b_out, *, m_tile=256):
    """Precompute folded constants once; return a jitted forward().

    w_gcn: (B, B)  GCNConv(B, B) weight (out_channels, in_channels)
    b_gcn: (B,)    GCNConv bias
    w_out: (2, N)  nn.Linear(N, 2) weight
    b_out: (2,)    nn.Linear(N, 2) bias

    forward(data) accepts (B, N) -> (B, 2) or batched (M, B, N) -> (M, B, 2).
    """
    B = w_gcn.shape[0]
    n_out, N = w_out.shape
    K = B * N
    assert B * n_out <= LANE, "output packing assumes B * n_out <= 128"

    # data @ A_norm (A_norm = ones/N) == per-row mean; fold the mean and W_g^T into a
    # single (B*N, B) matrix so the whole GCN step is one matmul on flattened data.
    wgT = jnp.transpose(w_gcn).astype(jnp.float32)                       # (B, B)
    r_fold = jnp.repeat(wgT, N, axis=0) * (1.0 / N)                      # (B*N, B)
    bg = b_gcn.reshape(1, B).astype(jnp.float32)                         # (1, B)
    # relu(h) is constant along the N node columns -> output Linear is rank-1.
    s = jnp.sum(w_out.astype(jnp.float32), axis=1)                       # (n_out,)
    p_small = jnp.kron(jnp.eye(B, dtype=jnp.float32), s[None, :])        # (B, B*n_out)
    p_pad = jnp.zeros((B, LANE), jnp.float32).at[:, : B * n_out].set(p_small)
    bo_pad = jnp.zeros((1, LANE), jnp.float32).at[:, : B * n_out].set(
        jnp.tile(b_out.astype(jnp.float32), B))

    def _forward(data):
        single = data.ndim == 2
        x = data[None] if single else data                               # (M, B, N)
        M = x.shape[0]
        mt = min(m_tile, _round_up(M, 8))
        m_pad = _round_up(M, mt)
        x2 = x.reshape(M, K).astype(jnp.float32)                         # (M, B*N)
        if m_pad != M:
            x2 = jnp.pad(x2, ((0, m_pad - M), (0, 0)))

        out_pad = pl.pallas_call(
            attain_disc_kernel,
            out_shape=jax.ShapeDtypeStruct((m_pad, LANE), jnp.float32),
            grid=(m_pad // mt,),
            in_specs=[
                pl.BlockSpec((mt, K), lambda i: (i, 0)),       # streamed data tiles
                pl.BlockSpec((K, B), lambda i: (0, 0)),        # resident folded weight
                pl.BlockSpec((1, B), lambda i: (0, 0)),        # resident GCN bias
                pl.BlockSpec((B, LANE), lambda i: (0, 0)),     # resident rank-1 expansion
                pl.BlockSpec((1, LANE), lambda i: (0, 0)),     # resident output bias
            ],
            out_specs=pl.BlockSpec((mt, LANE), lambda i: (i, 0)),
            compiler_params=pltpu.CompilerParams(
                dimension_semantics=("parallel",)),            # 2x on v7x (2 TCs)
        )(x2, r_fold, bg, p_pad, bo_pad)

        out = out_pad[:M, : B * n_out].reshape(M, B, n_out)
        return out[0] if single else out

    return jax.jit(_forward)


# ----------------------------- reference (pure JAX) -----------------------------

def build_gcn_norm_adjacency(num_nodes):
    """EdgeMatrix.get_all_connected_indices() ~ fully connected graph (i != j);
    GCNConv adds self loops and applies symmetric normalization (== ones/N)."""
    ii, jj = jnp.meshgrid(jnp.arange(num_nodes), jnp.arange(num_nodes), indexing="ij")
    adj = jnp.where(ii != jj, 1.0, 0.0)
    a_hat = adj + jnp.eye(num_nodes)
    deg = a_hat.sum(axis=1)
    d_inv_sqrt = 1.0 / jnp.sqrt(deg)
    return d_inv_sqrt[:, None] * a_hat * d_inv_sqrt[None, :]


def reference_forward(data, a_norm, w_gcn, b_gcn, w_out, b_out):
    """Literal transcription of the PyTorch forward (dense GCN, explicit adjacency)."""
    x = data.T                                                   # (N, B)
    h = a_norm @ (x @ w_gcn.T) + b_gcn[None, :]                  # (N, B)
    y = jnp.maximum(h, 0.0).T                                    # (B, N)
    return y @ w_out.T + b_out[None, :]                          # (B, 2)


if __name__ == "__main__":
    # config.batch_size = 8, input_size = 16 (config.hidden_size unused in forward);
    # M independent forwards are batched per pallas_call to amortize launch overhead.
    B, N = 8, 16
    M = 512

    key = jax.random.PRNGKey(0)
    k_data, k_wg, k_bg, k_wo, k_bo = jax.random.split(key, 5)

    data = jax.random.normal(k_data, (M, B, N), dtype=jnp.float32)     # M stacked forwards
    w_gcn = jax.random.normal(k_wg, (B, B), dtype=jnp.float32) * 0.1   # GCNConv(B, B) weight
    b_gcn = jax.random.normal(k_bg, (B,), dtype=jnp.float32) * 0.1     # GCNConv bias
    w_out = jax.random.normal(k_wo, (2, N), dtype=jnp.float32) * 0.1   # nn.Linear(N, 2) weight
    b_out = jax.random.normal(k_bo, (2,), dtype=jnp.float32) * 0.1     # nn.Linear(N, 2) bias

    forward = make_attain_discriminator(w_gcn, b_gcn, w_out, b_out, m_tile=256)

    out = jax.block_until_ready(forward(data))                          # (M, B, 2)

    a_norm = build_gcn_norm_adjacency(N)  # explicit adjacency only for the reference
    ref = jax.vmap(
        lambda d: reference_forward(d, a_norm, w_gcn, b_gcn, w_out, b_out))(data)

    assert out.shape == (M, B, 2)
    assert jnp.allclose(out, ref, atol=1e-4, rtol=1e-4), (out[0], ref[0])

    # Single-sample path (the module's native signature: (B, N) -> (B, 2)).
    out1 = jax.block_until_ready(forward(data[0]))
    assert out1.shape == (B, 2)
    assert jnp.allclose(out1, ref[0], atol=1e-4, rtol=1e-4), (out1, ref[0])

    print("KERNEL_OK")
</pallas_src>

<mosaic_0001>
module attributes {stable_mosaic.version = 11 : i64} {
  func.func @attain_disc_kernel(%arg0: i32, %arg1: memref<256x128xf32, #tpu.memory_space<vmem>>, %arg2: memref<128x8xf32, #tpu.memory_space<vmem>>, %arg3: memref<1x8xf32, #tpu.memory_space<vmem>>, %arg4: memref<8x128xf32, #tpu.memory_space<vmem>>, %arg5: memref<1x128xf32, #tpu.memory_space<vmem>>, %arg6: memref<256x128xf32, #tpu.memory_space<vmem>>) attributes {dimension_semantics = [#tpu.dimension_semantics<parallel>], iteration_bounds = array<i64: 2>, scalar_prefetch = 0 : i64, scratch_operands = 0 : i64, tpu.core_type = #tpu.core_type<tc>, window_params = [{transform_indices = @transform_0, window_bounds = array<i64: 256, 128>}, {pipeline_mode = #tpu.pipeline_mode<synchronous>, transform_indices = @transform_1, window_bounds = array<i64: 128, 8>}, {pipeline_mode = #tpu.pipeline_mode<synchronous>, transform_indices = @transform_2, window_bounds = array<i64: 1, 8>}, {pipeline_mode = #tpu.pipeline_mode<synchronous>, transform_indices = @transform_3, window_bounds = array<i64: 8, 128>}, {pipeline_mode = #tpu.pipeline_mode<synchronous>, transform_indices = @transform_4, window_bounds = array<i64: 1, 128>}, {transform_indices = @transform_5, window_bounds = array<i64: 256, 128>}]} {
    %c0 = arith.constant 0 : index
    %c0_0 = arith.constant 0 : index
    %0 = vector.load %arg1[%c0, %c0_0] : memref<256x128xf32, #tpu.memory_space<vmem>>, vector<256x128xf32>
    %c0_1 = arith.constant 0 : index
    %c0_2 = arith.constant 0 : index
    %1 = vector.load %arg2[%c0_1, %c0_2] : memref<128x8xf32, #tpu.memory_space<vmem>>, vector<128x8xf32>
    %cst = arith.constant dense<0.000000e+00> : vector<256x8xf32>
    %2 = tpu.matmul %0, %1, %cst {dimension_numbers = #tpu.dot_dimension_numbers<[1], [0], [0], [1], [0, 0, 1, 1], [], []>} : vector<256x128xf32>, vector<128x8xf32>, vector<256x8xf32> -> vector<256x8xf32>
    %c0_3 = arith.constant 0 : index
    %c0_4 = arith.constant 0 : index
    %3 = vector.load %arg3[%c0_3, %c0_4] : memref<1x8xf32, #tpu.memory_space<vmem>>, vector<1x8xf32>
    %4 = vector.broadcast %3 : vector<1x8xf32> to vector<256x8xf32>
    %5 = arith.addf %2, %4 : vector<256x8xf32>
    %cst_5 = arith.constant 0.000000e+00 : f32
    %6 = vector.broadcast %cst_5 : f32 to vector<256x8xf32>
    %7 = arith.maximumf %5, %6 : vector<256x8xf32>
    %c0_6 = arith.constant 0 : index
    %c0_7 = arith.constant 0 : index
    %8 = vector.load %arg4[%c0_6, %c0_7] : memref<8x128xf32, #tpu.memory_space<vmem>>, vector<8x128xf32>
    %cst_8 = arith.constant dense<0.000000e+00> : vector<256x128xf32>
    %9 = tpu.matmul %7, %8, %cst_8 {dimension_numbers = #tpu.dot_dimension_numbers<[1], [0], [0], [1], [0, 0, 1, 1], [], []>} : vector<256x8xf32>, vector<8x128xf32>, vector<256x128xf32> -> vector<256x128xf32>
    %c0_9 = arith.constant 0 : index
    %c0_10 = arith.constant 0 : index
    %10 = vector.load %arg5[%c0_9, %c0_10] : memref<1x128xf32, #tpu.memory_space<vmem>>, vector<1x128xf32>
    %11 = vector.broadcast %10 : vector<1x128xf32> to vector<256x128xf32>
    %12 = arith.addf %9, %11 : vector<256x128xf32>
    %c0_11 = arith.constant 0 : index
    %c0_12 = arith.constant 0 : index
    %13 = vector.load %arg6[%c0_11, %c0_12] : memref<256x128xf32, #tpu.memory_space<vmem>>, vector<256x128xf32>
    tpu.vector_store %arg6[%c0_11, %c0_12], %12 {strides = array<i32>} : memref<256x128xf32, #tpu.memory_space<vmem>>, vector<256x128xf32>,
    return
  }
  func.func @transform_0(%arg0: i32) -> (i32, i32) {
    %c0_i32 = arith.constant 0 : i32
    %c0_i32_0 = arith.constant 0 : i32
    return %arg0, %c0_i32 : i32, i32
  }
  func.func @transform_1(%arg0: i32) -> (i32, i32) {
    %c0_i32 = arith.constant 0 : i32
    %c0_i32_0 = arith.constant 0 : i32
    %c0_i32_1 = arith.constant 0 : i32
    return %c0_i32, %c0_i32_0 : i32, i32
  }
  func.func @transform_2(%arg0: i32) -> (i32, i32) {
    %c0_i32 = arith.constant 0 : i32
    %c0_i32_0 = arith.constant 0 : i32
    %c0_i32_1 = arith.constant 0 : i32
    return %c0_i32, %c0_i32_0 : i32, i32
  }
  func.func @transform_3(%arg0: i32) -> (i32, i32) {
    %c0_i32 = arith.constant 0 : i32
    %c0_i32_0 = arith.constant 0 : i32
    %c0_i32_1 = arith.constant 0 : i32
    return %c0_i32, %c0_i32_0 : i32, i32
  }
  func.func @transform_4(%arg0: i32) -> (i32, i32) {
    %c0_i32 = arith.constant 0 : i32
    %c0_i32_0 = arith.constant 0 : i32
    %c0_i32_1 = arith.constant 0 : i32
    return %c0_i32, %c0_i32_0 : i32, i32
  }
  func.func @transform_5(%arg0: i32) -> (i32, i32) {
    %c0_i32 = arith.constant 0 : i32
    %c0_i32_0 = arith.constant 0 : i32
    return %arg0, %c0_i32 : i32, i32
  }
}

</mosaic_0001>

<llo_original>
// kernel: _forward.1
$region0: #{_forward.1}
  #allocation0 [shape = 'u32[]', space=smem, size = 0x4, offset = 0x4, fixed_abs, tag = 'smem constant byte address 0x4 - core index']
  #allocation1 [shape = 'u32[144,128]{1,0:T(1,128)}', space=vmem, size = 0x12000, scoped, tag = 'internal scratch']
  %s0 = inlined_call_operand.vmem [shape: f32[512,128], index: 0, kind: input, shape index: {}]
  %s1 = inlined_call_operand.vmem [shape: f32[128,8], index: 1, kind: input, shape index: {}]
  %s2 = inlined_call_operand.vmem [shape: f32[1,8], index: 2, kind: input, shape index: {}]
  %s3 = inlined_call_operand.vmem [shape: f32[8,128], index: 3, kind: input, shape index: {}]
  %s4 = inlined_call_operand.vmem [shape: f32[1,128], index: 4, kind: input, shape index: {}]
  %s5 = inlined_call_operand.vmem [shape: f32[512,128], index: 5, kind: output, shape index: {}]
  %s6 = sld [smem:[#allocation0]]
  $region53: #{_forward.1} parent=0
    _
  %s8 = ssub.s32 1, %s6
  %s9 = scalar_select 0, %s8, %s6
  loop: start=0, step=1, limit=4
  $region2: #{_forward.1} parent=0 // loop_pre_header
    _
  $region3: #{_forward.1} parent=0 // loop_header
    %s11 = sphi 0, %s15
    %p12 = scmp.ge.s32.totalorder %s11, 4
    %s21 = sphi 0, %s23
    %s24 = sphi 0, %s21
    %s25 = sphi 0, %s24
    %s41 = sphi 0, %s25
    %s45 = sphi 0, %s45
    %s47 = sphi 0, %s45
    %s48 = sphi 0, %s47
    %s62 = sphi 0, %s48
    %s66 = sphi 0, %s66
    %s68 = sphi 0, %s66
    %s69 = sphi 0, %s68
    %s83 = sphi 0, %s69
    %s87 = sphi 0, %s87
    %s89 = sphi 0, %s87
    %s90 = sphi 0, %s89
    %s104 = sphi 0, %s90
    %s108 = sphi 0, %s108
    %s110 = sphi 0, %s108
    %s111 = sphi 0, %s110
    %s125 = sphi 0, %s111
    %s131 = sphi 0, %s133
    %s134 = sphi 0, %s131
    %s135 = sphi 0, %s134
    %s151 = sphi 0, %s135
  $region4: #{_forward.1} parent=0 // loop_header_branch
    %14 = sbr.rel (%p12) target = $region8
  $region5: #{_forward.1} parent=0 // loop_body
    %s16 = ssub.s32 %s11, 1
    %s17 = ssub.s32 %s11, 2
    %s18 = sadd.s32 %s11, 1
    %s19 = ssub.s32 %s11, %s18
    %p20 = scmp.eq.s32.totalorder %s19, 0
    %s22 = sadd.s32 %s21, 1
    %s23 = scalar_select %p20, %s21, %s22
    %p26 = pneg %p20
    %p27 = scmp.eq.s32.totalorder %s11, 1
    %p28 = por %p26, %p27
    %p29 = scmp.ne.s32.totalorder %s21, %s24
    %p30 = scmp.eq.s32.totalorder %s11, 0
    %p31 = por %p29, %p30
    %p32 = scmp.ne.s32.totalorder %s21, %s24
    %p33 = scmp.eq.s32.totalorder %s16, 1
    %p34 = por %p32, %p33
    %p35 = scmp.ne.s32.totalorder %s24, %s25
    %p36 = scmp.eq.s32.totalorder %s16, 0
    %p37 = por %p35, %p36
    %p38 = scmp.ne.s32.totalorder %s24, %s25
    %p39 = scmp.eq.s32.totalorder %s17, 1
    %p40 = por %p38, %p39
    %p42 = scmp.ne.s32.totalorder %s25, %s41
    %p43 = scmp.eq.s32.totalorder %s17, 0
    %p44 = por %p42, %p43
    %s46 = sadd.s32 %s45, 1
    %p49 = scmp.eq.s32.totalorder %s11, 1
    %p50 = scmp.ne.s32.totalorder %s45, %s47
    %p51 = scmp.eq.s32.totalorder %s11, 0
    %p52 = por %p50, %p51
    %p53 = scmp.ne.s32.totalorder %s45, %s47
    %p54 = scmp.eq.s32.totalorder %s16, 1
    %p55 = por %p53, %p54
    %p56 = scmp.ne.s32.totalorder %s47, %s48
    %p57 = scmp.eq.s32.totalorder %s16, 0
    %p58 = por %p56, %p57
    %p59 = scmp.ne.s32.totalorder %s47, %s48
    %p60 = scmp.eq.s32.totalorder %s17, 1
    %p61 = por %p59, %p60
    %p63 = scmp.ne.s32.totalorder %s48, %s62
    %p64 = scmp.eq.s32.totalorder %s17, 0
    %p65 = por %p63, %p64
    %s67 = sadd.s32 %s66, 1
    %p70 = scmp.eq.s32.totalorder %s11, 1
    %p71 = scmp.ne.s32.totalorder %s66, %s68
    %p72 = scmp.eq.s32.totalorder %s11, 0
    %p73 = por %p71, %p72
    %p74 = scmp.ne.s32.totalorder %s66, %s68
    %p75 = scmp.eq.s32.totalorder %s16, 1
    %p76 = por %p74, %p75
    %p77 = scmp.ne.s32.totalorder %s68, %s69
    %p78 = scmp.eq.s32.totalorder %s16, 0
    %p79 = por %p77, %p78
    %p80 = scmp.ne.s32.totalorder %s68, %s69
    %p81 = scmp.eq.s32.totalorder %s17, 1
    %p82 = por %p80, %p81
    %p84 = scmp.ne.s32.totalorder %s69, %s83
    %p85 = scmp.eq.s32.totalorder %s17, 0
    %p86 = por %p84, %p85
    %s88 = sadd.s32 %s87, 1
    %p91 = scmp.eq.s32.totalorder %s11, 1
    %p92 = scmp.ne.s32.totalorder %s87, %s89
    %p93 = scmp.eq.s32.totalorder %s11, 0
    %p94 = por %p92, %p93
    %p95 = scmp.ne.s32.totalorder %s87, %s89
    %p96 = scmp.eq.s32.totalorder %s16, 1
    %p97 = por %p95, %p96
    %p98 = scmp.ne.s32.totalorder %s89, %s90
    %p99 = scmp.eq.s32.totalorder %s16, 0
    %p100 = por %p98, %p99
    %p101 = scmp.ne.s32.totalorder %s89, %s90
    %p102 = scmp.eq.s32.totalorder %s17, 1
    %p103 = por %p101, %p102
    %p105 = scmp.ne.s32.totalorder %s90, %s104
    %p106 = scmp.eq.s32.totalorder %s17, 0
    %p107 = por %p105, %p106
    %s109 = sadd.s32 %s108, 1
    %p112 = scmp.eq.s32.totalorder %s11, 1
    %p113 = scmp.ne.s32.totalorder %s108, %s110
    %p114 = scmp.eq.s32.totalorder %s11, 0
    %p115 = por %p113, %p114
    %p116 = scmp.ne.s32.totalorder %s108, %s110
    %p117 = scmp.eq.s32.totalorder %s16, 1
    %p118 = por %p116, %p117
    %p119 = scmp.ne.s32.totalorder %s110, %s111
    %p120 = scmp.eq.s32.totalorder %s16, 0
    %p121 = por %p119, %p120
    %p122 = scmp.ne.s32.totalorder %s110, %s111
    %p123 = scmp.eq.s32.totalorder %s17, 1
    %p124 = por %p122, %p123
    %p126 = scmp.ne.s32.totalorder %s111, %s125
    %p127 = scmp.eq.s32.totalorder %s17, 0
    %p128 = por %p126, %p127
    %s129 = ssub.s32 %s11, %s18
    %p130 = scmp.eq.s32.totalorder %s129, 0
    %s132 = sadd.s32 %s131, 1
    %s133 = scalar_select %p130, %s131, %s132
    %p136 = pneg %p130
    %p137 = scmp.eq.s32.totalorder %s11, 1
    %p138 = por %p136, %p137
    %p139 = scmp.ne.s32.totalorder %s131, %s134
    %p140 = scmp.eq.s32.totalorder %s11, 0
    %p141 = por %p139, %p140
    %p142 = scmp.ne.s32.totalorder %s131, %s134
    %p143 = scmp.eq.s32.totalorder %s16, 1
    %p144 = por %p142, %p143
    %p145 = scmp.ne.s32.totalorder %s134, %s135
    %p146 = scmp.eq.s32.totalorder %s16, 0
    %p147 = por %p145, %p146
    %p148 = scmp.ne.s32.totalorder %s134, %s135
    %p149 = scmp.eq.s32.totalorder %s17, 1
    %p150 = por %p148, %p149
    %p152 = scmp.ne.s32.totalorder %s135, %s151
    %p153 = scmp.eq.s32.totalorder %s17, 0
    %p154 = por %p152, %p153
    %p155 = scmp.le.s32.totalorder 1, %s11
    %p156 = scmp.lt.s32.totalorder %s11, 3
    %p157 = pnand %p155, %p156
    %p158 = pneg %p157
    // Predicated region
    $region9: #{_forward.1} parent=5 // pred_check
      _
    $region10: #{_forward.1} parent=5 // pred_check_branch
      %160 = sbr.rel (%p157) target = $region12
    $region11: #{_forward.1} parent=5 // pred_region
      %s161 = ssub.s32 %s11, 1
      // Predicated region
      $region13: #{_forward.1} parent=11 // pred_check
        %p162 = pneg %p58
      $region14: #{_forward.1} parent=11 // pred_check_branch
        %164 = sbr.rel (%p162) target = $region16
      $region15: #{_forward.1} parent=11 // pred_region
        _
      $region16: #{_forward.1} parent=11 // pred_fallthru
        _
      // Predicated region
      $region17: #{_forward.1} parent=11 // pred_check
        %p165 = pneg %p79
      $region18: #{_forward.1} parent=11 // pred_check_branch
        %167 = sbr.rel (%p165) target = $region20
      $region19: #{_forward.1} parent=11 // pred_region
        _
      $region20: #{_forward.1} parent=11 // pred_fallthru
        _
      // Predicated region
      $region21: #{_forward.1} parent=11 // pred_check
        %p168 = pneg %p100
      $region22: #{_forward.1} parent=11 // pred_check_branch
        %170 = sbr.rel (%p168) target = $region24
      $region23: #{_forward.1} parent=11 // pred_region
        _
      $region24: #{_forward.1} parent=11 // pred_fallthru
        _
      // Predicated region
      $region25: #{_forward.1} parent=11 // pred_check
        %p171 = pneg %p121
      $region26: #{_forward.1} parent=11 // pred_check_branch
        %173 = sbr.rel (%p171) target = $region28
      $region27: #{_forward.1} parent=11 // pred_region
        _
      $region28: #{_forward.1} parent=11 // pred_fallthru
        _
    $region12: #{_forward.1} parent=5 // pred_fallthru
      _
    %p174 = scmp.lt.s32.totalorder %s11, 2
    // Predicated region
    $region29: #{_forward.1} parent=5 // pred_check
      %p175 = pneg %p174
    $region30: #{_forward.1} parent=5 // pred_check_branch
      %177 = sbr.rel (%p175) target = $region32
    $region31: #{_forward.1} parent=5 // pred_region
      // Predicated region
      $region33: #{_forward.1} parent=31 // pred_check
        %p178 = pneg %p31
      $region34: #{_forward.1} parent=31 // pred_check_branch
        %180 = sbr.rel (%p178) target = $region36
      $region35: #{_forward.1} parent=31 // pred_region
        %s181 = smul.u32 32, %s11
        %p182 = scmp.lt.s32.totalorder %s181, 63
        %s183 = scalar_select %p182, %s181, 63
        %s184 = smul.addr %s183, 8
        %s185 = scalar_lea.vmem %s0, %s184
        %s186 = smul.u32 32, %s11
      $region36: #{_forward.1} parent=31 // pred_fallthru
        _
    $region32: #{_forward.1} parent=5 // pred_fallthru
      _
    %p187 = scmp.le.s32.totalorder 1, %s11
    %p188 = scmp.lt.s32.totalorder %s11, 3
    %p189 = pnand %p187, %p188
    %p190 = pneg %p189
    // Predicated region
    $region37: #{_forward.1} parent=5 // pred_check
      _
    $region38: #{_forward.1} parent=5 // pred_check_branch
      %192 = sbr.rel (%p189) target = $region40
    $region39: #{_forward.1} parent=5 // pred_region
      %s193 = ssub.s32 %s11, 1
      %s194 = smul.u32 32, %s16
      %p195 = scmp.lt.s32.totalorder %s194, 63
      %s196 = scalar_select %p195, %s194, 63
      %s197 = smul.addr %s196, 8
      %s198 = scalar_lea.vmem %s0, %s197
      %p199 = pneg %p37
      %p200 = pneg %p34
      %p201 = pneg %p58
      %p202 = pneg %p55
      %p203 = pneg %p79
      %p204 = pneg %p76
      %p205 = pneg %p100
      %p206 = pneg %p97
      %p207 = pneg %p121
      %p208 = pneg %p118
      %p209 = pneg %p147
      %p210 = pneg %p144
      %s211 = smul.u32 32, %s16
      %p212 = scmp.lt.s32.totalorder %s211, 63
      %s213 = scalar_select %p212, %s211, 63
      %s214 = smul.addr %s213, 8
      %s215 = scalar_lea.vmem %s5, %s214
      %s216 = smul.u32 32, %s16
      %p217 = scmp.lt.s32.totalorder %s216, 63
      %s218 = scalar_select %p217, %s216, 63
      %s219 = smul.addr %s218, 8
      %s220 = scalar_lea.vmem %s0, %s219
      %s221 = smul.u32 32, %s16
      %s222 = smul.u32 32, %s16
      %p223 = scmp.lt.s32.totalorder %s222, 63
      %s224 = scalar_select %p223, %s222, 63
      %s225 = smul.addr %s224, 8
      %s226 = scalar_lea.vmem %s5, %s225
      %s227 = smul.u32 32, %s16
      %v228 = vld [vmem:[%s220] sm:$0xff]
      %v229 = vld [vmem:[%s220 + $0x8] sm:$0xff]
      %v230 = vld [vmem:[%s220 + $0x10] sm:$0xff]
      %v231 = vld [vmem:[%s220 + $0x18] sm:$0xff]
      %v232 = vld [vmem:[%s220 + $0x20] sm:$0xff]
      %v233 = vld [vmem:[%s220 + $0x28] sm:$0xff]
      %v234 = vld [vmem:[%s220 + $0x30] sm:$0xff]
      %v235 = vld [vmem:[%s220 + $0x38] sm:$0xff]
      %v236 = vld [vmem:[%s220 + $0x40] sm:$0xff]
      %v237 = vld [vmem:[%s220 + $0x48] sm:$0xff]
      %v238 = vld [vmem:[%s220 + $0x50] sm:$0xff]
      %v239 = vld [vmem:[%s220 + $0x58] sm:$0xff]
      %v240 = vld [vmem:[%s220 + $0x60] sm:$0xff]
      %v241 = vld [vmem:[%s220 + $0x68] sm:$0xff]
      %v242 = vld [vmem:[%s220 + $0x70] sm:$0xff]
      %v243 = vld [vmem:[%s220 + $0x78] sm:$0xff]
      %v244 = vld [vmem:[%s220 + $0x80] sm:$0xff]
      %v245 = vld [vmem:[%s220 + $0x88] sm:$0xff]
      %v246 = vld [vmem:[%s220 + $0x90] sm:$0xff]
      %v247 = vld [vmem:[%s220 + $0x98] sm:$0xff]
      %v248 = vld [vmem:[%s220 + $0xa0] sm:$0xff]
      %v249 = vld [vmem:[%s220 + $0xa8] sm:$0xff]
      %v250 = vld [vmem:[%s220 + $0xb0] sm:$0xff]
      %v251 = vld [vmem:[%s220 + $0xb8] sm:$0xff]
      %v252 = vld [vmem:[%s220 + $0xc0] sm:$0xff]
      %v253 = vld [vmem:[%s220 + $0xc8] sm:$0xff]
      %v254 = vld [vmem:[%s220 + $0xd0] sm:$0xff]
      %v255 = vld [vmem:[%s220 + $0xd8] sm:$0xff]
      %v256 = vld [vmem:[%s220 + $0xe0] sm:$0xff]
      %v257 = vld [vmem:[%s220 + $0xe8] sm:$0xff]
      %v258 = vld [vmem:[%s220 + $0xf0] sm:$0xff]
      %v259 = vld [vmem:[%s220 + $0xf8] sm:$0xff]
      %v260 = vld [vmem:[%s1] sm:$0xff]
      %v261 = vld [vmem:[%s1 + $0x8] sm:$0xff]
      %v262 = vld [vmem:[%s1 + $0x10] sm:$0xff]
      %v263 = vld [vmem:[%s1 + $0x18] sm:$0xff]
      %v264 = vld [vmem:[%s1 + $0x20] sm:$0xff]
      %v265 = vld [vmem:[%s1 + $0x28] sm:$0xff]
      %v266 = vld [vmem:[%s1 + $0x30] sm:$0xff]
      %v267 = vld [vmem:[%s1 + $0x38] sm:$0xff]
      %v268 = vld [vmem:[%s1 + $0x40] sm:$0xff]
      %v269 = vld [vmem:[%s1 + $0x48] sm:$0xff]
      %v270 = vld [vmem:[%s1 + $0x50] sm:$0xff]
      %v271 = vld [vmem:[%s1 + $0x58] sm:$0xff]
      %v272 = vld [vmem:[%s1 + $0x60] sm:$0xff]
      %v273 = vld [vmem:[%s1 + $0x68] sm:$0xff]
      %v274 = vld [vmem:[%s1 + $0x70] sm:$0xff]
      %v275 = vld [vmem:[%s1 + $0x78] sm:$0xff]
      %v276 = vld [vmem:[%s2] sm:$0x1]
      %v278 = vlaneseq
      %v279 = vshrl.u32 %v278, 7
      %v280 = vsub.s32 0, %v279
      %v281 = vrot.slane %v276, %v280
      %283 = vmatprep.subr.mxu0 0.0
      %284 = vmatpush1.msra.mxu0 %v260
      %285 = vmatprep.subr.mxu0 0.0
      %286 = vmatpush1.msra.mxu0 %v261
      %287 = vmatprep.subr.mxu0 0.0
      %288 = vmatpush1.msra.mxu0 %v262
      %289 = vmatprep.subr.mxu0 0.0
      %290 = vmatpush1.msra.mxu0 %v263
      %291 = vmatprep.subr.mxu0 0.0
      %292 = vmatpush1.msra.mxu0 %v264
      %293 = vmatprep.subr.mxu0 0.0
      %294 = vmatpush1.msra.mxu0 %v265
      %295 = vmatprep.subr.mxu0 0.0
      %296 = vmatpush1.msra.mxu0 %v266
      %297 = vmatprep.subr.mxu0 0.0
      %298 = vmatpush1.msra.mxu0 %v267
      %299 = vmatprep.subr.mxu0 0.0
      %300 = vmatpush1.msra.mxu0 %v268
      %301 = vmatprep.subr.mxu0 0.0
      %302 = vmatpush1.msra.mxu0 %v269
      %303 = vmatprep.subr.mxu0 0.0
      %304 = vmatpush1.msra.mxu0 %v270
      %305 = vmatprep.subr.mxu0 0.0
      %306 = vmatpush1.msra.mxu0 %v271
      %307 = vmatprep.subr.mxu0 0.0
      %308 = vmatpush1.msra.mxu0 %v272
      %309 = vmatprep.subr.mxu0 0.0
      %310 = vmatpush1.msra.mxu0 %v273
      %311 = vmatprep.subr.mxu0 0.0
      %312 = vmatpush1.msra.mxu0 %v274
      %313 = vmatprep.subr.mxu0 0.0
      %314 = vmatpush1.msra.mxu0 %v275
      %315 = vmatprep.subr.mxu0 0.0
      %316 = vmatpush1.msra.mxu0 0.0
      %317 = vmatprep.subr.mxu0 0.0
      %318 = vmatpush1.msra.mxu0 0.0
      %319 = vmatprep.subr.mxu0 0.0
      %320 = vmatpush1.msra.mxu0 0.0
      %321 = vmatprep.subr.mxu0 0.0
      %322 = vmatpush1.msra.mxu0 0.0
      %323 = vmatprep.subr.mxu0 0.0
      %324 = vmatpush1.msra.mxu0 0.0
      %325 = vmatprep.subr.mxu0 0.0
      %326 = vmatpush1.msra.mxu0 0.0
      %327 = vmatprep.subr.mxu0 0.0
      %328 = vmatpush1.msra.mxu0 0.0
      %329 = vmatprep.subr.mxu0 0.0
      %330 = vmatpush1.msra.mxu0 0.0
      %331 = vmatprep.subr.mxu0 0.0
      %332 = vmatpush1.msra.mxu0 0.0
      %333 = vmatprep.subr.mxu0 0.0
      %334 = vmatpush1.msra.mxu0 0.0
      %335 = vmatprep.subr.mxu0 0.0
      %336 = vmatpush1.msra.mxu0 0.0
      %337 = vmatprep.subr.mxu0 0.0
      %338 = vmatpush1.msra.mxu0 0.0
      %339 = vmatprep.subr.mxu0 0.0
      %340 = vmatpush1.msra.mxu0 0.0
      %341 = vmatprep.subr.mxu0 0.0
      %342 = vmatpush1.msra.mxu0 0.0
      %343 = vmatprep.subr.mxu0 0.0
      %344 = vmatpush1.msra.mxu0 0.0
      %345 = vmatprep.subr.mxu0 0.0
      %346 = vmatpush1.msra.mxu0 0.0
      %347 = vmatprep.mubr.f32.mxu0 0.0
      %348 = vmatmul.mubr.f32.gmra.mrb[0].mxu0 %v228
      %v349 = vpop.f32.mrb[0].mxu0
      %v350 = vadd.f32 %v281, %v349
      %v351 = vpop.f32.mrb[0].mxu0
      %352 = vmatprep.mubr.f32.mxu0 0.0
      %353 = vmatmul.mubr.f32.gmra.mrb[0].mxu0 %v229
      %v354 = vpop.f32.mrb[0].mxu0
      %v355 = vadd.f32 %v281, %v354
      %v356 = vpop.f32.mrb[0].mxu0
      %357 = vmatprep.mubr.f32.mxu0 0.0
      %358 = vmatmul.mubr.f32.gmra.mrb[0].mxu0 %v230
      %v359 = vpop.f32.mrb[0].mxu0
      %v360 = vadd.f32 %v281, %v359
      %v361 = vpop.f32.mrb[0].mxu0
      %362 = vmatprep.mubr.f32.mxu0 0.0
      %363 = vmatmul.mubr.f32.gmra.mrb[0].mxu0 %v231
      %v364 = vpop.f32.mrb[0].mxu0
      %v365 = vadd.f32 %v281, %v364
      %v366 = vpop.f32.mrb[0].mxu0
      %367 = vmatprep.mubr.f32.mxu0 0.0
      %368 = vmatmul.mubr.f32.gmra.mrb[0].mxu0 %v232
      %v369 = vpop.f32.mrb[0].mxu0
      %v370 = vadd.f32 %v281, %v369
      %v371 = vpop.f32.mrb[0].mxu0
      %372 = vmatprep.mubr.f32.mxu0 0.0
      %373 = vmatmul.mubr.f32.gmra.mrb[0].mxu0 %v233
      %v374 = vpop.f32.mrb[0].mxu0
      %v375 = vadd.f32 %v281, %v374
      %v376 = vpop.f32.mrb[0].mxu0
      %377 = vmatprep.mubr.f32.mxu0 0.0
      %378 = vmatmul.mubr.f32.gmra.mrb[0].mxu0 %v234
      %v379 = vpop.f32.mrb[0].mxu0
      %v380 = vadd.f32 %v281, %v379
      %v381 = vpop.f32.mrb[0].mxu0
      %382 = vmatprep.mubr.f32.mxu0 0.0
      %383 = vmatmul.mubr.f32.gmra.mrb[0].mxu0 %v235
      %v384 = vpop.f32.mrb[0].mxu0
      %v385 = vadd.f32 %v281, %v384
      %v386 = vpop.f32.mrb[0].mxu0
      %387 = vmatprep.mubr.f32.mxu0 0.0
      %388 = vmatmul.mubr.f32.gmra.mrb[0].mxu0 %v236
      %v389 = vpop.f32.mrb[0].mxu0
      %v390 = vadd.f32 %v281, %v389
      %v391 = vpop.f32.mrb[0].mxu0
      %392 = vmatprep.mubr.f32.mxu0 0.0
      %393 = vmatmul.mubr.f32.gmra.mrb[0].mxu0 %v237
      %v394 = vpop.f32.mrb[0].mxu0
      %v395 = vadd.f32 %v281, %v394
      %v396 = vpop.f32.mrb[0].mxu0
      %397 = vmatprep.mubr.f32.mxu0 0.0
      %398 = vmatmul.mubr.f32.gmra.mrb[0].mxu0 %v238
      %v399 = vpop.f32.mrb[0].mxu0
      %v400 = vadd.f32 %v281, %v399
      %v401 = vpop.f32.mrb[0].mxu0
      %402 = vmatprep.mubr.f32.mxu0 0.0
      %403 = vmatmul.mubr.f32.gmra.mrb[0].mxu0 %v239
      %v404 = vpop.f32.mrb[0].mxu0
      %v405 = vadd.f32 %v281, %v404
      %v406 = vpop.f32.mrb[0].mxu0
      %407 = vmatprep.mubr.f32.mxu0 0.0
      %408 = vmatmul.mubr.f32.gmra.mrb[0].mxu0 %v240
      %v409 = vpop.f32.mrb[0].mxu0
      %v410 = vadd.f32 %v281, %v409
      %v411 = vpop.f32.mrb[0].mxu0
      %412 = vmatprep.mubr.f32.mxu0 0.0
      %413 = vmatmul.mubr.f32.gmra.mrb[0].mxu0 %v241
      %v414 = vpop.f32.mrb[0].mxu0
      %v415 = vadd.f32 %v281, %v414
      %v416 = vpop.f32.mrb[0].mxu0
      %417 = vmatprep.mubr.f32.mxu0 0.0
      %418 = vmatmul.mubr.f32.gmra.mrb[0].mxu0 %v242
      %v419 = vpop.f32.mrb[0].mxu0
      %v420 = vadd.f32 %v281, %v419
      %v421 = vpop.f32.mrb[0].mxu0
      %422 = vmatprep.mubr.f32.mxu0 0.0
      %423 = vmatmul.mubr.f32.gmra.mrb[0].mxu0 %v243
      %v424 = vpop.f32.mrb[0].mxu0
      %v425 = vadd.f32 %v281, %v424
      %v426 = vpop.f32.mrb[0].mxu0
      %427 = vmatprep.mubr.f32.mxu0 0.0
      %428 = vmatmul.mubr.f32.gmra.mrb[0].mxu0 %v244
      %v429 = vpop.f32.mrb[0].mxu0
      %v430 = vadd.f32 %v281, %v429
      %v431 = vpop.f32.mrb[0].mxu0
      %432 = vmatprep.mubr.f32.mxu0 0.0
      %433 = vmatmul.mubr.f32.gmra.mrb[0].mxu0 %v245
      %v434 = vpop.f32.mrb[0].mxu0
      %v435 = vadd.f32 %v281, %v434
      %v436 = vpop.f32.mrb[0].mxu0
      %437 = vmatprep.mubr.f32.mxu0 0.0
      %438 = vmatmul.mubr.f32.gmra.mrb[0].mxu0 %v246
      %v439 = vpop.f32.mrb[0].mxu0
      %v440 = vadd.f32 %v281, %v439
      %v441 = vpop.f32.mrb[0].mxu0
      %442 = vmatprep.mubr.f32.mxu0 0.0
      %443 = vmatmul.mubr.f32.gmra.mrb[0].mxu0 %v247
      %v444 = vpop.f32.mrb[0].mxu0
      %v445 = vadd.f32 %v281, %v444
      %v446 = vpop.f32.mrb[0].mxu0
      %447 = vmatprep.mubr.f32.mxu0 0.0
      %448 = vmatmul.mubr.f32.gmra.mrb[0].mxu0 %v248
      %v449 = vpop.f32.mrb[0].mxu0
      %v450 = vadd.f32 %v281, %v449
      %v451 = vpop.f32.mrb[0].mxu0
      %452 = vmatprep.mubr.f32.mxu0 0.0
      %453 = vmatmul.mubr.f32.gmra.mrb[0].mxu0 %v249
      %v454 = vpop.f32.mrb[0].mxu0
      %v455 = vadd.f32 %v281, %v454
      %v456 = vpop.f32.mrb[0].mxu0
      %457 = vmatprep.mubr.f32.mxu0 0.0
      %458 = vmatmul.mubr.f32.gmra.mrb[0].mxu0 %v250
      %v459 = vpop.f32.mrb[0].mxu0
      %v460 = vadd.f32 %v281, %v459
      %v461 = vpop.f32.mrb[0].mxu0
      %462 = vmatprep.mubr.f32.mxu0 0.0
      %463 = vmatmul.mubr.f32.gmra.mrb[0].mxu0 %v251
      %v464 = vpop.f32.mrb[0].mxu0
      %v465 = vadd.f32 %v281, %v464
      %v466 = vpop.f32.mrb[0].mxu0
      %467 = vmatprep.mubr.f32.mxu0 0.0
      %468 = vmatmul.mubr.f32.gmra.mrb[0].mxu0 %v252
      %v469 = vpop.f32.mrb[0].mxu0
      %v470 = vadd.f32 %v281, %v469
      %v471 = vpop.f32.mrb[0].mxu0
      %472 = vmatprep.mubr.f32.mxu0 0.0
      %473 = vmatmul.mubr.f32.gmra.mrb[0].mxu0 %v253
      %v474 = vpop.f32.mrb[0].mxu0
      %v475 = vadd.f32 %v281, %v474
      %v476 = vpop.f32.mrb[0].mxu0
      %477 = vmatprep.mubr.f32.mxu0 0.0
      %478 = vmatmul.mubr.f32.gmra.mrb[0].mxu0 %v254
      %v479 = vpop.f32.mrb[0].mxu0
      %v480 = vadd.f32 %v281, %v479
      %v481 = vpop.f32.mrb[0].mxu0
      %482 = vmatprep.mubr.f32.mxu0 0.0
      %483 = vmatmul.mubr.f32.gmra.mrb[0].mxu0 %v255
      %v484 = vpop.f32.mrb[0].mxu0
      %v485 = vadd.f32 %v281, %v484
      %v486 = vpop.f32.mrb[0].mxu0
      %487 = vmatprep.mubr.f32.mxu0 0.0
      %488 = vmatmul.mubr.f32.gmra.mrb[0].mxu0 %v256
      %v489 = vpop.f32.mrb[0].mxu0
      %v490 = vadd.f32 %v281, %v489
      %v491 = vpop.f32.mrb[0].mxu0
      %492 = vmatprep.mubr.f32.mxu0 0.0
      %493 = vmatmul.mubr.f32.gmra.mrb[0].mxu0 %v257
      %v494 = vpop.f32.mrb[0].mxu0
      %v495 = vadd.f32 %v281, %v494
      %v496 = vpop.f32.mrb[0].mxu0
      %497 = vmatprep.mubr.f32.mxu0 0.0
      %498 = vmatmul.mubr.f32.gmra.mrb[0].mxu0 %v258
      %v499 = vpop.f32.mrb[0].mxu0
      %v500 = vadd.f32 %v281, %v499
      %v501 = vpop.f32.mrb[0].mxu0
      %502 = vmatprep.mubr.f32.mxu0 0.0
      %503 = vmatmul.mubr.f32.gmra.mrb[0].mxu0 %v259
      %v504 = vpop.f32.mrb[0].mxu0
      %v505 = vadd.f32 %v281, %v504
      %v506 = vpop.f32.mrb[0].mxu0
      %507 = vdwg.mxu0
      %v508 = vmax.f32 %v350, 0.0
      %v509 = vmax.f32 %v355, 0.0
      %v510 = vmax.f32 %v360, 0.0
      %v511 = vmax.f32 %v365, 0.0
      %v512 = vmax.f32 %v370, 0.0
      %v513 = vmax.f32 %v375, 0.0
      %v514 = vmax.f32 %v380, 0.0
      %v515 = vmax.f32 %v385, 0.0
      %v516 = vmax.f32 %v390, 0.0
      %v517 = vmax.f32 %v395, 0.0
      %v518 = vmax.f32 %v400, 0.0
      %v519 = vmax.f32 %v405, 0.0
      %v520 = vmax.f32 %v410, 0.0
      %v521 = vmax.f32 %v415, 0.0
      %v522 = vmax.f32 %v420, 0.0
      %v523 = vmax.f32 %v425, 0.0
      %v524 = vmax.f32 %v430, 0.0
      %v525 = vmax.f32 %v435, 0.0
      %v526 = vmax.f32 %v440, 0.0
      %v527 = vmax.f32 %v445, 0.0
      %v528 = vmax.f32 %v450, 0.0
      %v529 = vmax.f32 %v455, 0.0
      %v530 = vmax.f32 %v460, 0.0
      %v531 = vmax.f32 %v465, 0.0
      %v532 = vmax.f32 %v470, 0.0
      %v533 = vmax.f32 %v475, 0.0
      %v534 = vmax.f32 %v480, 0.0
      %v535 = vmax.f32 %v485, 0.0
      %v536 = vmax.f32 %v490, 0.0
      %v537 = vmax.f32 %v495, 0.0
      %v538 = vmax.f32 %v500, 0.0
      %v539 = vmax.f32 %v505, 0.0
      %v540 = vld [vmem:[%s3] sm:$0xff]
      %v541 = vld [vmem:[%s4] sm:$0x1]
      %v543 = vlaneseq
      %v544 = vshrl.u32 %v543, 7
      %v545 = vsub.s32 0, %v544
      %v546 = vrot.slane %v541, %v545
      %vm548 = vcmask 64512
      %v550 = vsel %vm548, %v508, 0
      %v553 = vsel %vm548, %v509, 0
      %v556 = vsel %vm548, %v510, 0
      %v559 = vsel %vm548, %v511, 0
      %v562 = vsel %vm548, %v512, 0
      %v565 = vsel %vm548, %v513, 0
      %v568 = vsel %vm548, %v514, 0
      %v571 = vsel %vm548, %v515, 0
      %v574 = vsel %vm548, %v516, 0
      %v577 = vsel %vm548, %v517, 0
      %v580 = vsel %vm548, %v518, 0
      %v583 = vsel %vm548, %v519, 0
      %v586 = vsel %vm548, %v520, 0
      %v589 = vsel %vm548, %v521, 0
      %v592 = vsel %vm548, %v522, 0
      %v595 = vsel %vm548, %v523, 0
      %v598 = vsel %vm548, %v524, 0
      %v601 = vsel %vm548, %v525, 0
      %v604 = vsel %vm548, %v526, 0
      %v607 = vsel %vm548, %v527, 0
      %v610 = vsel %vm548, %v528, 0
      %v613 = vsel %vm548, %v529, 0
      %v616 = vsel %vm548, %v530, 0
      %v619 = vsel %vm548, %v531, 0
      %v622 = vsel %vm548, %v532, 0
      %v625 = vsel %vm548, %v533, 0
      %v628 = vsel %vm548, %v534, 0
      %v631 = vsel %vm548, %v535, 0
      %v634 = vsel %vm548, %v536, 0
      %v637 = vsel %vm548, %v537, 0
      %v640 = vsel %vm548, %v538, 0
      %v643 = vsel %vm548, %v539, 0
      %645 = vmatprep.subr.mxu0 0.0
      %646 = vmatpush1.msra.mxu0 %v540
      %647 = vmatprep.subr.mxu0 0.0
      %648 = vmatpush1.msra.mxu0 0.0
      %649 = vmatprep.subr.mxu0 0.0
      %650 = vmatpush1.msra.mxu0 0.0
      %651 = vmatprep.subr.mxu0 0.0
      %652 = vmatpush1.msra.mxu0 0.0
      %653 = vmatprep.subr.mxu0 0.0
      %654 = vmatpush1.msra.mxu0 0.0
      %655 = vmatprep.subr.mxu0 0.0
      %656 = vmatpush1.msra.mxu0 0.0
      %657 = vmatprep.subr.mxu0 0.0
      %658 = vmatpush1.msra.mxu0 0.0
      %659 = vmatprep.subr.mxu0 0.0
      %660 = vmatpush1.msra.mxu0 0.0
      %661 = vmatprep.subr.mxu0 0.0
      %662 = vmatpush1.msra.mxu0 0.0
      %663 = vmatprep.subr.mxu0 0.0
      %664 = vmatpush1.msra.mxu0 0.0
      %665 = vmatprep.subr.mxu0 0.0
      %666 = vmatpush1.msra.mxu0 0.0
      %667 = vmatprep.subr.mxu0 0.0
      %668 = vmatpush1.msra.mxu0 0.0
      %669 = vmatprep.subr.mxu0 0.0
      %670 = vmatpush1.msra.mxu0 0.0
      %671 = vmatprep.subr.mxu0 0.0
      %672 = vmatpush1.msra.mxu0 0.0
      %673 = vmatprep.subr.mxu0 0.0
      %674 = vmatpush1.msra.mxu0 0.0
      %675 = vmatprep.subr.mxu0 0.0
      %676 = vmatpush1.msra.mxu0 0.0
      %677 = vmatprep.subr.mxu0 0.0
      %678 = vmatpush1.msra.mxu0 0.0
      %679 = vmatprep.subr.mxu0 0.0
      %680 = vmatpush1.msra.mxu0 0.0
      %681 = vmatprep.subr.mxu0 0.0
      %682 = vmatpush1.msra.mxu0 0.0
      %683 = vmatprep.subr.mxu0 0.0
      %684 = vmatpush1.msra.mxu0 0.0
      %685 = vmatprep.subr.mxu0 0.0
      %686 = vmatpush1.msra.mxu0 0.0
      %687 = vmatprep.subr.mxu0 0.0
      %688 = vmatpush1.msra.mxu0 0.0
      %689 = vmatprep.subr.mxu0 0.0
      %690 = vmatpush1.msra.mxu0 0.0
      %691 = vmatprep.subr.mxu0 0.0
      %692 = vmatpush1.msra.mxu0 0.0
      %693 = vmatprep.subr.mxu0 0.0
      %694 = vmatpush1.msra.mxu0 0.0
      %695 = vmatprep.subr.mxu0 0.0
      %696 = vmatpush1.msra.mxu0 0.0
      %697 = vmatprep.subr.mxu0 0.0
      %698 = vmatpush1.msra.mxu0 0.0
      %699 = vmatprep.subr.mxu0 0.0
      %700 = vmatpush1.msra.mxu0 0.0
      %701 = vmatprep.subr.mxu0 0.0
      %702 = vmatpush1.msra.mxu0 0.0
      %703 = vmatprep.subr.mxu0 0.0
      %704 = vmatpush1.msra.mxu0 0.0
      %705 = vmatprep.subr.mxu0 0.0
      %706 = vmatpush1.msra.mxu0 0.0
      %707 = vmatprep.subr.mxu0 0.0
      %708 = vmatpush1.msra.mxu0 0.0
      %709 = vmatprep.mubr.f32.mxu0 0.0
      %710 = vmatmul.mubr.f32.gmra.mrb[0].mxu0 %v550
      %v711 = vpop.f32.mrb[0].mxu0
      %v712 = vadd.f32 %v546, %v711
      %v713 = vpop.f32.mrb[0].mxu0
      %714 = vmatprep.mubr.f32.mxu0 0.0
      %715 = vmatmul.mubr.f32.gmra.mrb[0].mxu0 %v553
      %v716 = vpop.f32.mrb[0].mxu0
      %v717 = vadd.f32 %v546, %v716
      %v718 = vpop.f32.mrb[0].mxu0
      %719 = vmatprep.mubr.f32.mxu0 0.0
      %720 = vmatmul.mubr.f32.gmra.mrb[0].mxu0 %v556
      %v721 = vpop.f32.mrb[0].mxu0
      %v722 = vadd.f32 %v546, %v721
      %v723 = vpop.f32.mrb[0].mxu0
      %724 = vmatprep.mubr.f32.mxu0 0.0
      %725 = vmatmul.mubr.f32.gmra.mrb[0].mxu0 %v559
      %v726 = vpop.f32.mrb[0].mxu0
      %v727 = vadd.f32 %v546, %v726
      %v728 = vpop.f32.mrb[0].mxu0
      %729 = vmatprep.mubr.f32.mxu0 0.0
      %730 = vmatmul.mubr.f32.gmra.mrb[0].mxu0 %v562
      %v731 = vpop.f32.mrb[0].mxu0
      %v732 = vadd.f32 %v546, %v731
      %v733 = vpop.f32.mrb[0].mxu0
      %734 = vmatprep.mubr.f32.mxu0 0.0
      %735 = vmatmul.mubr.f32.gmra.mrb[0].mxu0 %v565
      %v736 = vpop.f32.mrb[0].mxu0
      %v737 = vadd.f32 %v546, %v736
      %v738 = vpop.f32.mrb[0].mxu0
      %739 = vmatprep.mubr.f32.mxu0 0.0
      %740 = vmatmul.mubr.f32.gmra.mrb[0].mxu0 %v568
      %v741 = vpop.f32.mrb[0].mxu0
      %v742 = vadd.f32 %v546, %v741
      %v743 = vpop.f32.mrb[0].mxu0
      %744 = vmatprep.mubr.f32.mxu0 0.0
      %745 = vmatmul.mubr.f32.gmra.mrb[0].mxu0 %v571
      %v746 = vpop.f32.mrb[0].mxu0
      %v747 = vadd.f32 %v546, %v746
      %v748 = vpop.f32.mrb[0].mxu0
      %749 = vmatprep.mubr.f32.mxu0 0.0
      %750 = vmatmul.mubr.f32.gmra.mrb[0].mxu0 %v574
      %v751 = vpop.f32.mrb[0].mxu0
      %v752 = vadd.f32 %v546, %v751
      %v753 = vpop.f32.mrb[0].mxu0
      %754 = vmatprep.mubr.f32.mxu0 0.0
      %755 = vmatmul.mubr.f32.gmra.mrb[0].mxu0 %v577
      %v756 = vpop.f32.mrb[0].mxu0
      %v757 = vadd.f32 %v546, %v756
      %v758 = vpop.f32.mrb[0].mxu0
      %759 = vmatprep.mubr.f32.mxu0 0.0
      %760 = vmatmul.mubr.f32.gmra.mrb[0].mxu0 %v580
      %v761 = vpop.f32.mrb[0].mxu0
      %v762 = vadd.f32 %v546, %v761
      %v763 = vpop.f32.mrb[0].mxu0
      %764 = vmatprep.mubr.f32.mxu0 0.0
      %765 = vmatmul.mubr.f32.gmra.mrb[0].mxu0 %v583
      %v766 = vpop.f32.mrb[0].mxu0
      %v767 = vadd.f32 %v546, %v766
      %v768 = vpop.f32.mrb[0].mxu0
      %769 = vmatprep.mubr.f32.mxu0 0.0
      %770 = vmatmul.mubr.f32.gmra.mrb[0].mxu0 %v586
      %v771 = vpop.f32.mrb[0].mxu0
      %v772 = vadd.f32 %v546, %v771
      %v773 = vpop.f32.mrb[0].mxu0
      %774 = vmatprep.mubr.f32.mxu0 0.0
      %775 = vmatmul.mubr.f32.gmra.mrb[0].mxu0 %v589
      %v776 = vpop.f32.mrb[0].mxu0
      %v777 = vadd.f32 %v546, %v776
      %v778 = vpop.f32.mrb[0].mxu0
      %779 = vmatprep.mubr.f32.mxu0 0.0
      %780 = vmatmul.mubr.f32.gmra.mrb[0].mxu0 %v592
      %v781 = vpop.f32.mrb[0].mxu0
      %v782 = vadd.f32 %v546, %v781
      %v783 = vpop.f32.mrb[0].mxu0
      %784 = vmatprep.mubr.f32.mxu0 0.0
      %785 = vmatmul.mubr.f32.gmra.mrb[0].mxu0 %v595
      %v786 = vpop.f32.mrb[0].mxu0
      %v787 = vadd.f32 %v546, %v786
      %v788 = vpop.f32.mrb[0].mxu0
      %789 = vmatprep.mubr.f32.mxu0 0.0
      %790 = vmatmul.mubr.f32.gmra.mrb[0].mxu0 %v598
      %v791 = vpop.f32.mrb[0].mxu0
      %v792 = vadd.f32 %v546, %v791
      %v793 = vpop.f32.mrb[0].mxu0
      %794 = vmatprep.mubr.f32.mxu0 0.0
      %795 = vmatmul.mubr.f32.gmra.mrb[0].mxu0 %v601
      %v796 = vpop.f32.mrb[0].mxu0
      %v797 = vadd.f32 %v546, %v796
      %v798 = vpop.f32.mrb[0].mxu0
      %799 = vmatprep.mubr.f32.mxu0 0.0
      %800 = vmatmul.mubr.f32.gmra.mrb[0].mxu0 %v604
      %v801 = vpop.f32.mrb[0].mxu0
      %v802 = vadd.f32 %v546, %v801
      %v803 = vpop.f32.mrb[0].mxu0
      %804 = vmatprep.mubr.f32.mxu0 0.0
      %805 = vmatmul.mubr.f32.gmra.mrb[0].mxu0 %v607
      %v806 = vpop.f32.mrb[0].mxu0
      %v807 = vadd.f32 %v546, %v806
      %v808 = vpop.f32.mrb[0].mxu0
      %809 = vmatprep.mubr.f32.mxu0 0.0
      %810 = vmatmul.mubr.f32.gmra.mrb[0].mxu0 %v610
      %v811 = vpop.f32.mrb[0].mxu0
      %v812 = vadd.f32 %v546, %v811
      %v813 = vpop.f32.mrb[0].mxu0
      %814 = vmatprep.mubr.f32.mxu0 0.0
      %815 = vmatmul.mubr.f32.gmra.mrb[0].mxu0 %v613
      %v816 = vpop.f32.mrb[0].mxu0
      %v817 = vadd.f32 %v546, %v816
      %v818 = vpop.f32.mrb[0].mxu0
      %819 = vmatprep.mubr.f32.mxu0 0.0
      %820 = vmatmul.mubr.f32.gmra.mrb[0].mxu0 %v616
      %v821 = vpop.f32.mrb[0].mxu0
      %v822 = vadd.f32 %v546, %v821
      %v823 = vpop.f32.mrb[0].mxu0
      %824 = vmatprep.mubr.f32.mxu0 0.0
      %825 = vmatmul.mubr.f32.gmra.mrb[0].mxu0 %v619
      %v826 = vpop.f32.mrb[0].mxu0
      %v827 = vadd.f32 %v546, %v826
      %v828 = vpop.f32.mrb[0].mxu0
      %829 = vmatprep.mubr.f32.mxu0 0.0
      %830 = vmatmul.mubr.f32.gmra.mrb[0].mxu0 %v622
      %v831 = vpop.f32.mrb[0].mxu0
      %v832 = vadd.f32 %v546, %v831
      %v833 = vpop.f32.mrb[0].mxu0
      %834 = vmatprep.mubr.f32.mxu0 0.0
      %835 = vmatmul.mubr.f32.gmra.mrb[0].mxu0 %v625
      %v836 = vpop.f32.mrb[0].mxu0
      %v837 = vadd.f32 %v546, %v836
      %v838 = vpop.f32.mrb[0].mxu0
      %839 = vmatprep.mubr.f32.mxu0 0.0
      %840 = vmatmul.mubr.f32.gmra.mrb[0].mxu0 %v628
      %v841 = vpop.f32.mrb[0].mxu0
      %v842 = vadd.f32 %v546, %v841
      %v843 = vpop.f32.mrb[0].mxu0
      %844 = vmatprep.mubr.f32.mxu0 0.0
      %845 = vmatmul.mubr.f32.gmra.mrb[0].mxu0 %v631
      %v846 = vpop.f32.mrb[0].mxu0
      %v847 = vadd.f32 %v546, %v846
      %v848 = vpop.f32.mrb[0].mxu0
      %849 = vmatprep.mubr.f32.mxu0 0.0
      %850 = vmatmul.mubr.f32.gmra.mrb[0].mxu0 %v634
      %v851 = vpop.f32.mrb[0].mxu0
      %v852 = vadd.f32 %v546, %v851
      %v853 = vpop.f32.mrb[0].mxu0
      %854 = vmatprep.mubr.f32.mxu0 0.0
      %855 = vmatmul.mubr.f32.gmra.mrb[0].mxu0 %v637
      %v856 = vpop.f32.mrb[0].mxu0
      %v857 = vadd.f32 %v546, %v856
      %v858 = vpop.f32.mrb[0].mxu0
      %859 = vmatprep.mubr.f32.mxu0 0.0
      %860 = vmatmul.mubr.f32.gmra.mrb[0].mxu0 %v640
      %v861 = vpop.f32.mrb[0].mxu0
      %v862 = vadd.f32 %v546, %v861
      %v863 = vpop.f32.mrb[0].mxu0
      %864 = vmatprep.mubr.f32.mxu0 0.0
      %865 = vmatmul.mubr.f32.gmra.mrb[0].mxu0 %v643
      %v866 = vpop.f32.mrb[0].mxu0
      %v867 = vadd.f32 %v546, %v866
      %v868 = vpop.f32.mrb[0].mxu0
      %869 = vdwg.mxu0
      %870 = vst [vmem:[%s226] sm:$0xff] %v712
      %871 = vst [vmem:[%s226 + $0x8] sm:$0xff] %v717
      %872 = vst [vmem:[%s226 + $0x10] sm:$0xff] %v722
      %873 = vst [vmem:[%s226 + $0x18] sm:$0xff] %v727
      %874 = vst [vmem:[%s226 + $0x20] sm:$0xff] %v732
      %875 = vst [vmem:[%s226 + $0x28] sm:$0xff] %v737
      %876 = vst [vmem:[%s226 + $0x30] sm:$0xff] %v742
      %877 = vst [vmem:[%s226 + $0x38] sm:$0xff] %v747
      %878 = vst [vmem:[%s226 + $0x40] sm:$0xff] %v752
      %879 = vst [vmem:[%s226 + $0x48] sm:$0xff] %v757
      %880 = vst [vmem:[%s226 + $0x50] sm:$0xff] %v762
      %881 = vst [vmem:[%s226 + $0x58] sm:$0xff] %v767
      %882 = vst [vmem:[%s226 + $0x60] sm:$0xff] %v772
      %883 = vst [vmem:[%s226 + $0x68] sm:$0xff] %v777
      %884 = vst [vmem:[%s226 + $0x70] sm:$0xff] %v782
      %885 = vst [vmem:[%s226 + $0x78] sm:$0xff] %v787
      %886 = vst [vmem:[%s226 + $0x80] sm:$0xff] %v792
      %887 = vst [vmem:[%s226 + $0x88] sm:$0xff] %v797
      %888 = vst [vmem:[%s226 + $0x90] sm:$0xff] %v802
      %889 = vst [vmem:[%s226 + $0x98] sm:$0xff] %v807
      %890 = vst [vmem:[%s226 + $0xa0] sm:$0xff] %v812
      %891 = vst [vmem:[%s226 + $0xa8] sm:$0xff] %v817
      %892 = vst [vmem:[%s226 + $0xb0] sm:$0xff] %v822
      %893 = vst [vmem:[%s226 + $0xb8] sm:$0xff] %v827
      %894 = vst [vmem:[%s226 + $0xc0] sm:$0xff] %v832
      %895 = vst [vmem:[%s226 + $0xc8] sm:$0xff] %v837
      %896 = vst [vmem:[%s226 + $0xd0] sm:$0xff] %v842
      %897 = vst [vmem:[%s226 + $0xd8] sm:$0xff] %v847
      %898 = vst [vmem:[%s226 + $0xe0] sm:$0xff] %v852
      %899 = vst [vmem:[%s226 + $0xe8] sm:$0xff] %v857
      %900 = vst [vmem:[%s226 + $0xf0] sm:$0xff] %v862
      %901 = vst [vmem:[%s226 + $0xf8] sm:$0xff] %v867
      %s902 = smul.u32 32, %s16
      %p903 = scmp.lt.s32.totalorder %s902, 63
      %s904 = scalar_select %p903, %s902, 63
      %s905 = smul.addr %s904, 8
      %s906 = scalar_lea.vmem %s5, %s905
      // Predicated region
      $region41: #{_forward.1} parent=39 // pred_check
        %p907 = pneg %p144
      $region42: #{_forward.1} parent=39 // pred_check_branch
        %909 = sbr.rel (%p907) target = $region44
      $region43: #{_forward.1} parent=39 // pred_region
        %s910 = smul.u32 32, %s16
      $region44: #{_forward.1} parent=39 // pred_fallthru
        _
    $region40: #{_forward.1} parent=5 // pred_fallthru
      _
    %p911 = scmp.le.s32.totalorder 2, %s11
    // Predicated region
    $region45: #{_forward.1} parent=5 // pred_check
      %p912 = pneg %p911
    $region46: #{_forward.1} parent=5 // pred_check_branch
      %914 = sbr.rel (%p912) target = $region48
    $region47: #{_forward.1} parent=5 // pred_region
      %s915 = ssub.s32 %s11, 2
      // Predicated region
      $region49: #{_forward.1} parent=47 // pred_check
        %p916 = pneg %p150
      $region50: #{_forward.1} parent=47 // pred_check_branch
        %918 = sbr.rel (%p916) target = $region52
      $region51: #{_forward.1} parent=47 // pred_region
        %s919 = smul.u32 32, %s17
        %p920 = scmp.lt.s32.totalorder %s919, 63
        %s921 = scalar_select %p920, %s919, 63
        %s922 = smul.addr %s921, 8
        %s923 = scalar_lea.vmem %s5, %s922
      $region52: #{_forward.1} parent=47 // pred_fallthru
        _
    $region48: #{_forward.1} parent=5 // pred_fallthru
      _
  $region6: #{_forward.1} parent=0 // loop_footer
    %s15 = sadd.s32 1, %s11
  $region7: #{_forward.1} parent=0 // loop_footer_branch
    %10 = sbr.rel target = $region3
  $region8: #{_forward.1} parent=0 // loop_exit
    _

</llo_original>
